<compile_context>
chip_gen: v7x
topology: tpu7x:2x2x1
jax: 0.10.0
libtpu: 0.0.40
codegen_flags: <defaults>
</compile_context>

<pallas_src>
import functools

import jax
import jax.numpy as jnp
from jax.experimental import pallas as pl
from jax.experimental.pallas import tpu as pltpu

BERT_DIM = 768
LANE = 128


def _round_up(x, m):
    return ((x + m - 1) // m) * m


def _gru_encoder_kernel(x_ref, wg_ref, bg_ref, wo_ref, bo_ref, out_ref,
                        *, hidden, batch):
    """Fused post-BERT head.

    x_ref  : (2B, 768)  rows [0,B) = pooled text, rows [B,2B) = pooled context
    wg_ref : (768, 3H)  packed gate weights [W_ir | W_iz | W_in] (pre-transposed)
    bg_ref : (1, 4H)    packed gate biases  [b_r | b_z | b_in | b_hn]
    wo_ref : (2H, Cpad) rows [0,H) = W1^T @ W2a^T (fc1 folded into fc2-text half),
                        rows [H,2H) = W2b^T (fc2-context half); lane-padded
    bo_ref : (1, Cpad)  b1 @ W2a^T + b2, lane-padded
    out_ref: (B, Cpad)  lane-dense logits block
    """
    H, B = hidden, batch

    # ---- all six gate projections in ONE matmul: (2B, 768) @ (768, 3H) ----
    g = jnp.dot(x_ref[...], wg_ref[...], preferred_element_type=jnp.float32)
    b = bg_ref[...]

    # nn.GRU, single step (the unsqueeze(1)), h0 = 0  (so W_hh @ h0 == 0):
    #   r = sigmoid(W_ir x + b_ir + b_hr)
    #   z = sigmoid(W_iz x + b_iz + b_hz)
    #   n = tanh  (W_in x + b_in + r * b_hn)
    #   h = (1 - z) * n
    r = jax.nn.sigmoid(g[:, 0 * H:1 * H] + b[:, 0 * H:1 * H])
    z = jax.nn.sigmoid(g[:, 1 * H:2 * H] + b[:, 1 * H:2 * H])
    n = jnp.tanh(g[:, 2 * H:3 * H] + b[:, 2 * H:3 * H] + r * b[:, 3 * H:4 * H])
    h = (1.0 - z) * n                     # (2B, H): text rows then context rows

    # ---- fc2(concat(fc1(h_text), h_ctx)) with fc1 folded in (linear∘linear) ----
    # logits = h_text @ (W1^T W2a^T) + h_ctx @ W2b^T + (b1 W2a^T + b2)
    out_ref[...] = (
        jnp.dot(h[:B], wo_ref[0 * H:1 * H, :], preferred_element_type=jnp.float32)
        + jnp.dot(h[B:], wo_ref[1 * H:2 * H, :], preferred_element_type=jnp.float32)
        + bo_ref[...])


def init_params(key, hidden, num_classes, input_size=BERT_DIM):
    """PyTorch-layout parameters, PyTorch-default uniform(-1/sqrt(fan),1/sqrt(fan)) init."""
    ks = jax.random.split(key, 7)
    kg = 1.0 / jnp.sqrt(hidden)
    k1 = 1.0 / jnp.sqrt(hidden)
    k2 = 1.0 / jnp.sqrt(2 * hidden)
    u = lambda k, shape, s: jax.random.uniform(k, shape, jnp.float32, -s, s)
    return {
        # GRU (PyTorch layout: weight_ih_l0 (3H, in), biases (3H,), gate order r|z|n)
        "w_ih": u(ks[0], (3 * hidden, input_size), kg),
        "b_ih": u(ks[1], (3 * hidden,), kg),
        "b_hh": u(ks[2], (3 * hidden,), kg),
        # Note: weight_hh_l0 is mathematically unused (h0 == 0, single step).
        "w_fc1": u(ks[3], (hidden, hidden), k1),
        "b_fc1": u(ks[4], (hidden,), k1),
        "w_fc2": u(ks[5], (num_classes, 2 * hidden), k2),
        "b_fc2": u(ks[6], (num_classes,), k2),
    }


def pack_params(params, hidden, num_classes):
    """One-time repack of PyTorch-layout params into kernel-ready slabs.

    Run once at model-load time; the per-call forward path does no weight
    slicing / transposing / reshaping.
    """
    H = hidden
    c_pad = _round_up(max(num_classes, LANE), LANE)

    # packed gate weights, pre-transposed to [in, out]: (768, 3H), lane order r|z|n
    w_gates = jnp.asarray(params["w_ih"], jnp.float32).T

    b_ih = jnp.asarray(params["b_ih"], jnp.float32)
    b_hh = jnp.asarray(params["b_hh"], jnp.float32)
    gate_bias = jnp.concatenate([
        b_ih[0 * H:1 * H] + b_hh[0 * H:1 * H],   # b_r = b_ir + b_hr
        b_ih[1 * H:2 * H] + b_hh[1 * H:2 * H],   # b_z = b_iz + b_hz
        b_ih[2 * H:3 * H],                       # b_in
        b_hh[2 * H:3 * H],                       # b_hn (gets r * b_hn in-kernel)
    ]).reshape(1, 4 * H)

    # fc1 folded into fc2 (there is no activation between them in the module):
    #   logits = (h_t @ W1^T + b1) @ W2a^T + h_c @ W2b^T + b2
    #          =  h_t @ (W1^T W2a^T) + h_c @ W2b^T + (b1 W2a^T + b2)
    w2a = jnp.asarray(params["w_fc2"], jnp.float32)[:, :H].T      # (H, C)
    w2b = jnp.asarray(params["w_fc2"], jnp.float32)[:, H:].T      # (H, C)
    w_text = jnp.asarray(params["w_fc1"], jnp.float32).T @ w2a    # (H, C)
    b_out = jnp.asarray(params["b_fc1"], jnp.float32) @ w2a + params["b_fc2"]

    # pack both output weights row-wise; pad lanes to 128 for a lane-dense store
    w_out = jnp.zeros((2 * H, c_pad), jnp.float32)
    w_out = w_out.at[:H, :num_classes].set(w_text)
    w_out = w_out.at[H:, :num_classes].set(w2b)
    b_out_pad = jnp.zeros((1, c_pad), jnp.float32).at[0, :num_classes].set(b_out)

    return {"w_gates": w_gates, "gate_bias": gate_bias,
            "w_out": w_out, "b_out": b_out_pad}


@functools.partial(jax.jit, static_argnames=("hidden", "num_classes"))
def gru_encoder_forward(pooled_text, pooled_ctx, packed, hidden, num_classes):
    """pooled_text / pooled_ctx: (B, 768) float32 (the BERT pooler_output stand-ins)."""
    B = pooled_text.shape[0]
    c_pad = packed["w_out"].shape[1]

    # stack text + context on the batch (sublane) axis -> one gate matmul in-kernel
    x = jnp.concatenate([pooled_text, pooled_ctx], axis=0)       # (2B, 768)

    vmem = pl.BlockSpec(memory_space=pltpu.MemorySpace.VMEM)
    kernel = functools.partial(_gru_encoder_kernel, hidden=hidden, batch=B)

    # Whole-array VMEM blocks, no grid: total footprint is ~300 KB, so any
    # tiling/pipelining would only add per-step overhead.
    # TODO(synk): for large B, add a batch grid with
    # dimension_semantics=("parallel",) (and bf16 operands) so both v7x
    # TensorCores get work; irrelevant at B=2 on single-TC v5e/v6e.
    out = pl.pallas_call(
        kernel,
        out_shape=jax.ShapeDtypeStruct((B, c_pad), jnp.float32),
        in_specs=[vmem] * 5,
        out_specs=vmem,
    )(x, packed["w_gates"], packed["gate_bias"], packed["w_out"], packed["b_out"])

    return out[:, :num_classes]


def _reference_forward(pooled_text, pooled_ctx, params, hidden):
    """Pure-JAX reference mirroring the PyTorch forward (post-BERT)."""
    H = hidden

    def gru(x):
        g = x @ params["w_ih"].T + params["b_ih"]
        bhh = params["b_hh"]
        r = jax.nn.sigmoid(g[:, :H] + bhh[:H])
        z = jax.nn.sigmoid(g[:, H:2 * H] + bhh[H:2 * H])
        n = jnp.tanh(g[:, 2 * H:] + r * bhh[2 * H:])
        return (1.0 - z) * n

    out = gru(pooled_text)
    ctx = gru(pooled_ctx)
    out = out @ params["w_fc1"].T + params["b_fc1"]
    cat = jnp.concatenate([out, ctx], axis=1)
    return cat @ params["w_fc2"].T + params["b_fc2"]


if __name__ == "__main__":
    HIDDEN = 32
    NUM_CLASSES = 4
    BATCH = 2

    key = jax.random.PRNGKey(0)
    k_txt, k_ctx, k_par = jax.random.split(key, 3)

    # Stand-ins for BERT pooler_output (tanh-range values, shape (B, 768)).
    pooled_text = jnp.tanh(jax.random.normal(k_txt, (BATCH, BERT_DIM), jnp.float32))
    pooled_ctx = jnp.tanh(jax.random.normal(k_ctx, (BATCH, BERT_DIM), jnp.float32))

    params = init_params(k_par, HIDDEN, NUM_CLASSES)
    packed = pack_params(params, HIDDEN, NUM_CLASSES)   # one-time, off the hot path

    out = gru_encoder_forward(pooled_text, pooled_ctx, packed, HIDDEN, NUM_CLASSES)
    out = jax.block_until_ready(out)

    ref = _reference_forward(pooled_text, pooled_ctx, params, HIDDEN)
    assert out.shape == (BATCH, NUM_CLASSES)
    assert jnp.allclose(out, ref, atol=1e-4, rtol=1e-4), (out, ref)

    print("KERNEL_OK")
</pallas_src>

<mosaic_0001>
module attributes {stable_mosaic.version = 11 : i64} {
  func.func @_gru_encoder_kernel(%arg0: memref<4x768xf32, #tpu.memory_space<vmem>>, %arg1: memref<768x96xf32, #tpu.memory_space<vmem>>, %arg2: memref<1x128xf32, #tpu.memory_space<vmem>>, %arg3: memref<64x128xf32, #tpu.memory_space<vmem>>, %arg4: memref<1x128xf32, #tpu.memory_space<vmem>>, %arg5: memref<2x128xf32, #tpu.memory_space<vmem>>) attributes {dimension_semantics = [], scalar_prefetch = 0 : i64, scratch_operands = 0 : i64, tpu.core_type = #tpu.core_type<tc>} {
    %c0 = arith.constant 0 : index
    %c0_0 = arith.constant 0 : index
    %0 = vector.load %arg0[%c0, %c0_0] : memref<4x768xf32, #tpu.memory_space<vmem>>, vector<4x768xf32>
    %c0_1 = arith.constant 0 : index
    %c0_2 = arith.constant 0 : index
    %1 = vector.load %arg1[%c0_1, %c0_2] : memref<768x96xf32, #tpu.memory_space<vmem>>, vector<768x96xf32>
    %cst = arith.constant dense<0.000000e+00> : vector<4x96xf32>
    %2 = tpu.matmul %0, %1, %cst {dimension_numbers = #tpu.dot_dimension_numbers<[1], [0], [0], [1], [0, 0, 1, 1], [], []>} : vector<4x768xf32>, vector<768x96xf32>, vector<4x96xf32> -> vector<4x96xf32>
    %c0_3 = arith.constant 0 : index
    %c0_4 = arith.constant 0 : index
    %3 = vector.load %arg2[%c0_3, %c0_4] : memref<1x128xf32, #tpu.memory_space<vmem>>, vector<1x128xf32>
    %4 = vector.extract_strided_slice %2 {offsets = [0, 0], sizes = [4, 32], strides = [1, 1]} : vector<4x96xf32> to vector<4x32xf32>
    %5 = vector.extract_strided_slice %3 {offsets = [0, 0], sizes = [1, 32], strides = [1, 1]} : vector<1x128xf32> to vector<1x32xf32>
    %6 = vector.broadcast %5 : vector<1x32xf32> to vector<4x32xf32>
    %7 = arith.addf %4, %6 : vector<4x32xf32>
    %8 = arith.negf %7 : vector<4x32xf32>
    %9 = math.exp %8 : vector<4x32xf32>
    %cst_5 = arith.constant 1.000000e+00 : f32
    %10 = vector.broadcast %cst_5 : f32 to vector<4x32xf32>
    %11 = arith.addf %10, %9 : vector<4x32xf32>
    %12 = arith.divf %10, %11 : vector<4x32xf32>
    %13 = vector.extract_strided_slice %2 {offsets = [0, 32], sizes = [4, 32], strides = [1, 1]} : vector<4x96xf32> to vector<4x32xf32>
    %14 = vector.extract_strided_slice %3 {offsets = [0, 32], sizes = [1, 32], strides = [1, 1]} : vector<1x128xf32> to vector<1x32xf32>
    %15 = vector.broadcast %14 : vector<1x32xf32> to vector<4x32xf32>
    %16 = arith.addf %13, %15 : vector<4x32xf32>
    %17 = arith.negf %16 : vector<4x32xf32>
    %18 = math.exp %17 : vector<4x32xf32>
    %cst_6 = arith.constant 1.000000e+00 : f32
    %19 = vector.broadcast %cst_6 : f32 to vector<4x32xf32>
    %20 = arith.addf %19, %18 : vector<4x32xf32>
    %21 = arith.divf %19, %20 : vector<4x32xf32>
    %22 = vector.extract_strided_slice %2 {offsets = [0, 64], sizes = [4, 32], strides = [1, 1]} : vector<4x96xf32> to vector<4x32xf32>
    %23 = vector.extract_strided_slice %3 {offsets = [0, 64], sizes = [1, 32], strides = [1, 1]} : vector<1x128xf32> to vector<1x32xf32>
    %24 = vector.broadcast %23 : vector<1x32xf32> to vector<4x32xf32>
    %25 = arith.addf %22, %24 : vector<4x32xf32>
    %26 = vector.extract_strided_slice %3 {offsets = [0, 96], sizes = [1, 32], strides = [1, 1]} : vector<1x128xf32> to vector<1x32xf32>
    %27 = vector.broadcast %26 : vector<1x32xf32> to vector<4x32xf32>
    %28 = arith.mulf %12, %27 : vector<4x32xf32>
    %29 = arith.addf %25, %28 : vector<4x32xf32>
    %30 = math.tanh %29 : vector<4x32xf32>
    %cst_7 = arith.constant 1.000000e+00 : f32
    %31 = vector.broadcast %cst_7 : f32 to vector<4x32xf32>
    %32 = arith.subf %31, %21 : vector<4x32xf32>
    %33 = arith.mulf %32, %30 : vector<4x32xf32>
    %34 = vector.extract_strided_slice %33 {offsets = [0, 0], sizes = [2, 32], strides = [1, 1]} : vector<4x32xf32> to vector<2x32xf32>
    %c0_8 = arith.constant 0 : index
    %c0_9 = arith.constant 0 : index
    %35 = vector.load %arg3[%c0_8, %c0_9] : memref<64x128xf32, #tpu.memory_space<vmem>>, vector<32x128xf32>
    %cst_10 = arith.constant dense<0.000000e+00> : vector<2x128xf32>
    %36 = tpu.matmul %34, %35, %cst_10 {dimension_numbers = #tpu.dot_dimension_numbers<[1], [0], [0], [1], [0, 0, 1, 1], [], []>} : vector<2x32xf32>, vector<32x128xf32>, vector<2x128xf32> -> vector<2x128xf32>
    %37 = vector.extract_strided_slice %33 {offsets = [2, 0], sizes = [2, 32], strides = [1, 1]} : vector<4x32xf32> to vector<2x32xf32>
    %c32 = arith.constant 32 : index
    %c0_11 = arith.constant 0 : index
    %38 = vector.load %arg3[%c32, %c0_11] : memref<64x128xf32, #tpu.memory_space<vmem>>, vector<32x128xf32>
    %cst_12 = arith.constant dense<0.000000e+00> : vector<2x128xf32>
    %39 = tpu.matmul %37, %38, %cst_12 {dimension_numbers = #tpu.dot_dimension_numbers<[1], [0], [0], [1], [0, 0, 1, 1], [], []>} : vector<2x32xf32>, vector<32x128xf32>, vector<2x128xf32> -> vector<2x128xf32>
    %40 = arith.addf %36, %39 : vector<2x128xf32>
    %c0_13 = arith.constant 0 : index
    %c0_14 = arith.constant 0 : index
    %41 = vector.load %arg4[%c0_13, %c0_14] : memref<1x128xf32, #tpu.memory_space<vmem>>, vector<1x128xf32>
    %42 = vector.broadcast %41 : vector<1x128xf32> to vector<2x128xf32>
    %43 = arith.addf %40, %42 : vector<2x128xf32>
    %c0_15 = arith.constant 0 : index
    %c0_16 = arith.constant 0 : index
    %44 = vector.load %arg5[%c0_15, %c0_16] : memref<2x128xf32, #tpu.memory_space<vmem>>, vector<2x128xf32>
    tpu.vector_store %arg5[%c0_15, %c0_16], %43 {strides = array<i32>} : memref<2x128xf32, #tpu.memory_space<vmem>>, vector<2x128xf32>,
    return
  }
}

</mosaic_0001>

<llo_original>
// kernel: gru_encoder_forward.1
$region0: #{gru_encoder_forward.1}
  #allocation0 [shape = 'u32[]', space=smem, size = 0x4, offset = 0x4, fixed_abs, tag = 'smem constant byte address 0x4 - core index']
  #allocation1 [shape = 'u32[144,128]{1,0:T(1,128)}', space=vmem, size = 0x12000, scoped, tag = 'internal scratch']
  %s0 = inlined_call_operand.vmem [shape: f32[4,768], index: 0, kind: input, shape index: {}]
  %s1 = inlined_call_operand.vmem [shape: f32[768,96], index: 1, kind: input, shape index: {}]
  %s2 = inlined_call_operand.vmem [shape: f32[1,128], index: 2, kind: input, shape index: {}]
  %s3 = inlined_call_operand.vmem [shape: f32[64,128], index: 3, kind: input, shape index: {}]
  %s4 = inlined_call_operand.vmem [shape: f32[1,128], index: 4, kind: input, shape index: {}]
  %s5 = inlined_call_operand.hbm [shape: f32[2,128], index: 5, kind: output, shape index: {}]
  %s6 = sld [smem:[#allocation0]]
  $region30: #{gru_encoder_forward.1} parent=0
    _
  %s8 = ssub.s32 1, %s6
  %s9 = scalar_select 0, %s8, %s6
  $region1: #{gru_encoder_forward.1} parent=0
    #allocation2 [shape = 'u8[1024]{0}', space=vmem, size = 0x400, scoped, tag = 'output window, operand 0, single buffered']
    #allocation3 [shape = 's32[1]{0}', space=sflag, size = 0x4, scoped, tag = 'scoped memory for gru_encoder_forward.1']
    %10 = vsyncpa [#allocation3], 0
    // Predicated region
    $region2: #{gru_encoder_forward.1} parent=1 // pred_check
      _
    $region3: #{gru_encoder_forward.1} parent=1 // pred_check_branch
      %12 = sbr.rel (0) target = $region5
    $region4: #{gru_encoder_forward.1} parent=1 // pred_region
      _
    $region5: #{gru_encoder_forward.1} parent=1 // pred_fallthru
      _
    // Predicated region
    $region6: #{gru_encoder_forward.1} parent=1 // pred_check
      _
    $region7: #{gru_encoder_forward.1} parent=1 // pred_check_branch
      %14 = sbr.rel (0) target = $region9
    $region8: #{gru_encoder_forward.1} parent=1 // pred_region
      _
    $region9: #{gru_encoder_forward.1} parent=1 // pred_fallthru
      _
    // Predicated region
    $region10: #{gru_encoder_forward.1} parent=1 // pred_check
      _
    $region11: #{gru_encoder_forward.1} parent=1 // pred_check_branch
      %16 = sbr.rel (0) target = $region13
    $region12: #{gru_encoder_forward.1} parent=1 // pred_region
      _
    $region13: #{gru_encoder_forward.1} parent=1 // pred_fallthru
      _
    // Predicated region
    $region14: #{gru_encoder_forward.1} parent=1 // pred_check
      _
    $region15: #{gru_encoder_forward.1} parent=1 // pred_check_branch
      %18 = sbr.rel (0) target = $region17
    $region16: #{gru_encoder_forward.1} parent=1 // pred_region
      _
    $region17: #{gru_encoder_forward.1} parent=1 // pred_fallthru
      _
    // Predicated region
    $region18: #{gru_encoder_forward.1} parent=1 // pred_check
      _
    $region19: #{gru_encoder_forward.1} parent=1 // pred_check_branch
      %20 = sbr.rel (0) target = $region21
    $region20: #{gru_encoder_forward.1} parent=1 // pred_region
      _
    $region21: #{gru_encoder_forward.1} parent=1 // pred_fallthru
      _
    %v21 = vld [vmem:[%s0] sm:$0xff]
    %v22 = vld [vmem:[%s0 + $0x8] sm:$0xff]
    %v23 = vld [vmem:[%s0 + $0x10] sm:$0xff]
    %v24 = vld [vmem:[%s1] sm:$0xff]
    %v25 = vld [vmem:[%s1 + $0x8] sm:$0xff]
    %v26 = vld [vmem:[%s1 + $0x10] sm:$0xff]
    %v27 = vld [vmem:[%s1 + $0x18] sm:$0xff]
    %v28 = vld [vmem:[%s1 + $0x20] sm:$0xff]
    %v29 = vld [vmem:[%s1 + $0x28] sm:$0xff]
    %v30 = vld [vmem:[%s1 + $0x30] sm:$0xff]
    %v31 = vld [vmem:[%s1 + $0x38] sm:$0xff]
    %v32 = vld [vmem:[%s1 + $0x40] sm:$0xff]
    %v33 = vld [vmem:[%s1 + $0x48] sm:$0xff]
    %v34 = vld [vmem:[%s1 + $0x50] sm:$0xff]
    %v35 = vld [vmem:[%s1 + $0x58] sm:$0xff]
    %v36 = vld [vmem:[%s1 + $0x60] sm:$0xff]
    %v37 = vld [vmem:[%s1 + $0x68] sm:$0xff]
    %v38 = vld [vmem:[%s1 + $0x70] sm:$0xff]
    %v39 = vld [vmem:[%s1 + $0x78] sm:$0xff]
    %v40 = vld [vmem:[%s1 + $0x80] sm:$0xff]
    %v41 = vld [vmem:[%s1 + $0x88] sm:$0xff]
    %v42 = vld [vmem:[%s1 + $0x90] sm:$0xff]
    %v43 = vld [vmem:[%s1 + $0x98] sm:$0xff]
    %v44 = vld [vmem:[%s1 + $0xa0] sm:$0xff]
    %v45 = vld [vmem:[%s1 + $0xa8] sm:$0xff]
    %v46 = vld [vmem:[%s1 + $0xb0] sm:$0xff]
    %v47 = vld [vmem:[%s1 + $0xb8] sm:$0xff]
    %v48 = vld [vmem:[%s1 + $0xc0] sm:$0xff]
    %v49 = vld [vmem:[%s1 + $0xc8] sm:$0xff]
    %v50 = vld [vmem:[%s1 + $0xd0] sm:$0xff]
    %v51 = vld [vmem:[%s1 + $0xd8] sm:$0xff]
    %v52 = vld [vmem:[%s1 + $0xe0] sm:$0xff]
    %v53 = vld [vmem:[%s1 + $0xe8] sm:$0xff]
    %v54 = vld [vmem:[%s1 + $0xf0] sm:$0xff]
    %v55 = vld [vmem:[%s1 + $0xf8] sm:$0xff]
    %v56 = vld [vmem:[%s1 + $0x100] sm:$0xff]
    %v57 = vld [vmem:[%s1 + $0x108] sm:$0xff]
    %v58 = vld [vmem:[%s1 + $0x110] sm:$0xff]
    %v59 = vld [vmem:[%s1 + $0x118] sm:$0xff]
    %v60 = vld [vmem:[%s1 + $0x120] sm:$0xff]
    %v61 = vld [vmem:[%s1 + $0x128] sm:$0xff]
    %v62 = vld [vmem:[%s1 + $0x130] sm:$0xff]
    %v63 = vld [vmem:[%s1 + $0x138] sm:$0xff]
    %v64 = vld [vmem:[%s1 + $0x140] sm:$0xff]
    %v65 = vld [vmem:[%s1 + $0x148] sm:$0xff]
    %v66 = vld [vmem:[%s1 + $0x150] sm:$0xff]
    %v67 = vld [vmem:[%s1 + $0x158] sm:$0xff]
    %v68 = vld [vmem:[%s1 + $0x160] sm:$0xff]
    %v69 = vld [vmem:[%s1 + $0x168] sm:$0xff]
    %v70 = vld [vmem:[%s1 + $0x170] sm:$0xff]
    %v71 = vld [vmem:[%s1 + $0x178] sm:$0xff]
    %v72 = vld [vmem:[%s1 + $0x180] sm:$0xff]
    %v73 = vld [vmem:[%s1 + $0x188] sm:$0xff]
    %v74 = vld [vmem:[%s1 + $0x190] sm:$0xff]
    %v75 = vld [vmem:[%s1 + $0x198] sm:$0xff]
    %v76 = vld [vmem:[%s1 + $0x1a0] sm:$0xff]
    %v77 = vld [vmem:[%s1 + $0x1a8] sm:$0xff]
    %v78 = vld [vmem:[%s1 + $0x1b0] sm:$0xff]
    %v79 = vld [vmem:[%s1 + $0x1b8] sm:$0xff]
    %v80 = vld [vmem:[%s1 + $0x1c0] sm:$0xff]
    %v81 = vld [vmem:[%s1 + $0x1c8] sm:$0xff]
    %v82 = vld [vmem:[%s1 + $0x1d0] sm:$0xff]
    %v83 = vld [vmem:[%s1 + $0x1d8] sm:$0xff]
    %v84 = vld [vmem:[%s1 + $0x1e0] sm:$0xff]
    %v85 = vld [vmem:[%s1 + $0x1e8] sm:$0xff]
    %v86 = vld [vmem:[%s1 + $0x1f0] sm:$0xff]
    %v87 = vld [vmem:[%s1 + $0x1f8] sm:$0xff]
    %v88 = vld [vmem:[%s1 + $0x200] sm:$0xff]
    %v89 = vld [vmem:[%s1 + $0x208] sm:$0xff]
    %v90 = vld [vmem:[%s1 + $0x210] sm:$0xff]
    %v91 = vld [vmem:[%s1 + $0x218] sm:$0xff]
    %v92 = vld [vmem:[%s1 + $0x220] sm:$0xff]
    %v93 = vld [vmem:[%s1 + $0x228] sm:$0xff]
    %v94 = vld [vmem:[%s1 + $0x230] sm:$0xff]
    %v95 = vld [vmem:[%s1 + $0x238] sm:$0xff]
    %v96 = vld [vmem:[%s1 + $0x240] sm:$0xff]
    %v97 = vld [vmem:[%s1 + $0x248] sm:$0xff]
    %v98 = vld [vmem:[%s1 + $0x250] sm:$0xff]
    %v99 = vld [vmem:[%s1 + $0x258] sm:$0xff]
    %v100 = vld [vmem:[%s1 + $0x260] sm:$0xff]
    %v101 = vld [vmem:[%s1 + $0x268] sm:$0xff]
    %v102 = vld [vmem:[%s1 + $0x270] sm:$0xff]
    %v103 = vld [vmem:[%s1 + $0x278] sm:$0xff]
    %v104 = vld [vmem:[%s1 + $0x280] sm:$0xff]
    %v105 = vld [vmem:[%s1 + $0x288] sm:$0xff]
    %v106 = vld [vmem:[%s1 + $0x290] sm:$0xff]
    %v107 = vld [vmem:[%s1 + $0x298] sm:$0xff]
    %v108 = vld [vmem:[%s1 + $0x2a0] sm:$0xff]
    %v109 = vld [vmem:[%s1 + $0x2a8] sm:$0xff]
    %v110 = vld [vmem:[%s1 + $0x2b0] sm:$0xff]
    %v111 = vld [vmem:[%s1 + $0x2b8] sm:$0xff]
    %v112 = vld [vmem:[%s1 + $0x2c0] sm:$0xff]
    %v113 = vld [vmem:[%s1 + $0x2c8] sm:$0xff]
    %v114 = vld [vmem:[%s1 + $0x2d0] sm:$0xff]
    %v115 = vld [vmem:[%s1 + $0x2d8] sm:$0xff]
    %v116 = vld [vmem:[%s1 + $0x2e0] sm:$0xff]
    %v117 = vld [vmem:[%s1 + $0x2e8] sm:$0xff]
    %v118 = vld [vmem:[%s1 + $0x2f0] sm:$0xff]
    %v119 = vld [vmem:[%s1 + $0x2f8] sm:$0xff]
    %v123 = vcombine.high %v21, %v21
    %v124 = vcombine.high %v22, %v22
    %v125 = vcombine.high %v23, %v23
    %129 = vmatprep.subr.mxu0 0.0
    %130 = vmatpush1.msra.mxu0 %v24
    %131 = vmatprep.subr.mxu0 0.0
    %132 = vmatpush1.msra.mxu0 %v25
    %133 = vmatprep.subr.mxu0 0.0
    %134 = vmatpush1.msra.mxu0 %v26
    %135 = vmatprep.subr.mxu0 0.0
    %136 = vmatpush1.msra.mxu0 %v27
    %137 = vmatprep.subr.mxu0 0.0
    %138 = vmatpush1.msra.mxu0 %v28
    %139 = vmatprep.subr.mxu0 0.0
    %140 = vmatpush1.msra.mxu0 %v29
    %141 = vmatprep.subr.mxu0 0.0
    %142 = vmatpush1.msra.mxu0 %v30
    %143 = vmatprep.subr.mxu0 0.0
    %144 = vmatpush1.msra.mxu0 %v31
    %145 = vmatprep.subr.mxu0 0.0
    %146 = vmatpush1.msra.mxu0 %v32
    %147 = vmatprep.subr.mxu0 0.0
    %148 = vmatpush1.msra.mxu0 %v33
    %149 = vmatprep.subr.mxu0 0.0
    %150 = vmatpush1.msra.mxu0 %v34
    %151 = vmatprep.subr.mxu0 0.0
    %152 = vmatpush1.msra.mxu0 %v35
    %153 = vmatprep.subr.mxu0 0.0
    %154 = vmatpush1.msra.mxu0 %v36
    %155 = vmatprep.subr.mxu0 0.0
    %156 = vmatpush1.msra.mxu0 %v37
    %157 = vmatprep.subr.mxu0 0.0
    %158 = vmatpush1.msra.mxu0 %v38
    %159 = vmatprep.subr.mxu0 0.0
    %160 = vmatpush1.msra.mxu0 %v39
    %161 = vmatprep.subr.mxu0 0.0
    %162 = vmatpush1.msra.mxu0 %v40
    %163 = vmatprep.subr.mxu0 0.0
    %164 = vmatpush1.msra.mxu0 %v41
    %165 = vmatprep.subr.mxu0 0.0
    %166 = vmatpush1.msra.mxu0 %v42
    %167 = vmatprep.subr.mxu0 0.0
    %168 = vmatpush1.msra.mxu0 %v43
    %169 = vmatprep.subr.mxu0 0.0
    %170 = vmatpush1.msra.mxu0 %v44
    %171 = vmatprep.subr.mxu0 0.0
    %172 = vmatpush1.msra.mxu0 %v45
    %173 = vmatprep.subr.mxu0 0.0
    %174 = vmatpush1.msra.mxu0 %v46
    %175 = vmatprep.subr.mxu0 0.0
    %176 = vmatpush1.msra.mxu0 %v47
    %177 = vmatprep.subr.mxu0 0.0
    %178 = vmatpush1.msra.mxu0 %v48
    %179 = vmatprep.subr.mxu0 0.0
    %180 = vmatpush1.msra.mxu0 %v49
    %181 = vmatprep.subr.mxu0 0.0
    %182 = vmatpush1.msra.mxu0 %v50
    %183 = vmatprep.subr.mxu0 0.0
    %184 = vmatpush1.msra.mxu0 %v51
    %185 = vmatprep.subr.mxu0 0.0
    %186 = vmatpush1.msra.mxu0 %v52
    %187 = vmatprep.subr.mxu0 0.0
    %188 = vmatpush1.msra.mxu0 %v53
    %189 = vmatprep.subr.mxu0 0.0
    %190 = vmatpush1.msra.mxu0 %v54
    %191 = vmatprep.subr.mxu0 0.0
    %192 = vmatpush1.msra.mxu0 %v55
    %193 = vmatprep.mubr.f32.mxu0 %v123
    %194 = vmatmul.mubr.f32.gmra.mrb[0].mxu0 %v21
    %v195 = vpop.f32.mrb[0].mxu0
    %v196 = vadd.f32 0.0, %v195
    %v197 = vpop.f32.mrb[0].mxu0
    %198 = vdwg.mxu0
    %199 = vmatprep.subr.mxu0 0.0
    %200 = vmatpush1.msra.mxu0 %v56
    %201 = vmatprep.subr.mxu0 0.0
    %202 = vmatpush1.msra.mxu0 %v57
    %203 = vmatprep.subr.mxu0 0.0
    %204 = vmatpush1.msra.mxu0 %v58
    %205 = vmatprep.subr.mxu0 0.0
    %206 = vmatpush1.msra.mxu0 %v59
    %207 = vmatprep.subr.mxu0 0.0
    %208 = vmatpush1.msra.mxu0 %v60
    %209 = vmatprep.subr.mxu0 0.0
    %210 = vmatpush1.msra.mxu0 %v61
    %211 = vmatprep.subr.mxu0 0.0
    %212 = vmatpush1.msra.mxu0 %v62
    %213 = vmatprep.subr.mxu0 0.0
    %214 = vmatpush1.msra.mxu0 %v63
    %215 = vmatprep.subr.mxu0 0.0
    %216 = vmatpush1.msra.mxu0 %v64
    %217 = vmatprep.subr.mxu0 0.0
    %218 = vmatpush1.msra.mxu0 %v65
    %219 = vmatprep.subr.mxu0 0.0
    %220 = vmatpush1.msra.mxu0 %v66
    %221 = vmatprep.subr.mxu0 0.0
    %222 = vmatpush1.msra.mxu0 %v67
    %223 = vmatprep.subr.mxu0 0.0
    %224 = vmatpush1.msra.mxu0 %v68
    %225 = vmatprep.subr.mxu0 0.0
    %226 = vmatpush1.msra.mxu0 %v69
    %227 = vmatprep.subr.mxu0 0.0
    %228 = vmatpush1.msra.mxu0 %v70
    %229 = vmatprep.subr.mxu0 0.0
    %230 = vmatpush1.msra.mxu0 %v71
    %231 = vmatprep.subr.mxu0 0.0
    %232 = vmatpush1.msra.mxu0 %v72
    %233 = vmatprep.subr.mxu0 0.0
    %234 = vmatpush1.msra.mxu0 %v73
    %235 = vmatprep.subr.mxu0 0.0
    %236 = vmatpush1.msra.mxu0 %v74
    %237 = vmatprep.subr.mxu0 0.0
    %238 = vmatpush1.msra.mxu0 %v75
    %239 = vmatprep.subr.mxu0 0.0
    %240 = vmatpush1.msra.mxu0 %v76
    %241 = vmatprep.subr.mxu0 0.0
    %242 = vmatpush1.msra.mxu0 %v77
    %243 = vmatprep.subr.mxu0 0.0
    %244 = vmatpush1.msra.mxu0 %v78
    %245 = vmatprep.subr.mxu0 0.0
    %246 = vmatpush1.msra.mxu0 %v79
    %247 = vmatprep.subr.mxu0 0.0
    %248 = vmatpush1.msra.mxu0 %v80
    %249 = vmatprep.subr.mxu0 0.0
    %250 = vmatpush1.msra.mxu0 %v81
    %251 = vmatprep.subr.mxu0 0.0
    %252 = vmatpush1.msra.mxu0 %v82
    %253 = vmatprep.subr.mxu0 0.0
    %254 = vmatpush1.msra.mxu0 %v83
    %255 = vmatprep.subr.mxu0 0.0
    %256 = vmatpush1.msra.mxu0 %v84
    %257 = vmatprep.subr.mxu0 0.0
    %258 = vmatpush1.msra.mxu0 %v85
    %259 = vmatprep.subr.mxu0 0.0
    %260 = vmatpush1.msra.mxu0 %v86
    %261 = vmatprep.subr.mxu0 0.0
    %262 = vmatpush1.msra.mxu0 %v87
    %263 = vmatprep.mubr.f32.mxu0 %v124
    %264 = vmatmul.mubr.f32.gmra.mrb[0].mxu0 %v22
    %v265 = vpop.f32.mrb[0].mxu0
    %v266 = vadd.f32 %v196, %v265
    %v267 = vpop.f32.mrb[0].mxu0
    %268 = vdwg.mxu0
    %269 = vmatprep.subr.mxu0 0.0
    %270 = vmatpush1.msra.mxu0 %v88
    %271 = vmatprep.subr.mxu0 0.0
    %272 = vmatpush1.msra.mxu0 %v89
    %273 = vmatprep.subr.mxu0 0.0
    %274 = vmatpush1.msra.mxu0 %v90
    %275 = vmatprep.subr.mxu0 0.0
    %276 = vmatpush1.msra.mxu0 %v91
    %277 = vmatprep.subr.mxu0 0.0
    %278 = vmatpush1.msra.mxu0 %v92
    %279 = vmatprep.subr.mxu0 0.0
    %280 = vmatpush1.msra.mxu0 %v93
    %281 = vmatprep.subr.mxu0 0.0
    %282 = vmatpush1.msra.mxu0 %v94
    %283 = vmatprep.subr.mxu0 0.0
    %284 = vmatpush1.msra.mxu0 %v95
    %285 = vmatprep.subr.mxu0 0.0
    %286 = vmatpush1.msra.mxu0 %v96
    %287 = vmatprep.subr.mxu0 0.0
    %288 = vmatpush1.msra.mxu0 %v97
    %289 = vmatprep.subr.mxu0 0.0
    %290 = vmatpush1.msra.mxu0 %v98
    %291 = vmatprep.subr.mxu0 0.0
    %292 = vmatpush1.msra.mxu0 %v99
    %293 = vmatprep.subr.mxu0 0.0
    %294 = vmatpush1.msra.mxu0 %v100
    %295 = vmatprep.subr.mxu0 0.0
    %296 = vmatpush1.msra.mxu0 %v101
    %297 = vmatprep.subr.mxu0 0.0
    %298 = vmatpush1.msra.mxu0 %v102
    %299 = vmatprep.subr.mxu0 0.0
    %300 = vmatpush1.msra.mxu0 %v103
    %301 = vmatprep.subr.mxu0 0.0
    %302 = vmatpush1.msra.mxu0 %v104
    %303 = vmatprep.subr.mxu0 0.0
    %304 = vmatpush1.msra.mxu0 %v105
    %305 = vmatprep.subr.mxu0 0.0
    %306 = vmatpush1.msra.mxu0 %v106
    %307 = vmatprep.subr.mxu0 0.0
    %308 = vmatpush1.msra.mxu0 %v107
    %309 = vmatprep.subr.mxu0 0.0
    %310 = vmatpush1.msra.mxu0 %v108
    %311 = vmatprep.subr.mxu0 0.0
    %312 = vmatpush1.msra.mxu0 %v109
    %313 = vmatprep.subr.mxu0 0.0
    %314 = vmatpush1.msra.mxu0 %v110
    %315 = vmatprep.subr.mxu0 0.0
    %316 = vmatpush1.msra.mxu0 %v111
    %317 = vmatprep.subr.mxu0 0.0
    %318 = vmatpush1.msra.mxu0 %v112
    %319 = vmatprep.subr.mxu0 0.0
    %320 = vmatpush1.msra.mxu0 %v113
    %321 = vmatprep.subr.mxu0 0.0
    %322 = vmatpush1.msra.mxu0 %v114
    %323 = vmatprep.subr.mxu0 0.0
    %324 = vmatpush1.msra.mxu0 %v115
    %325 = vmatprep.subr.mxu0 0.0
    %326 = vmatpush1.msra.mxu0 %v116
    %327 = vmatprep.subr.mxu0 0.0
    %328 = vmatpush1.msra.mxu0 %v117
    %329 = vmatprep.subr.mxu0 0.0
    %330 = vmatpush1.msra.mxu0 %v118
    %331 = vmatprep.subr.mxu0 0.0
    %332 = vmatpush1.msra.mxu0 %v119
    %333 = vmatprep.mubr.f32.mxu0 %v125
    %334 = vmatmul.mubr.f32.gmra.mrb[0].mxu0 %v23
    %v335 = vpop.f32.mrb[0].mxu0
    %v336 = vadd.f32 %v266, %v335
    %v337 = vpop.f32.mrb[0].mxu0
    %338 = vdwg.mxu0
    %v339 = vld [vmem:[%s2] sm:$0x1]
    %v341 = vlaneseq
    %v342 = vshrl.u32 %v341, 7
    %v343 = vsub.s32 0, %v342
    %v344 = vrot.slane %v339, %v343
    %v346 = vadd.f32 %v336, %v344
    %v347 = vxor.u32 %v346, 2147483648
    %v348 = vmul.f32 %v347, 1.442695
    %v349 = vpow.pop %v348
    %v350 = vadd.f32 %v349, 1.0
    %v351 = vrcp.pop %v350
    %v352 = vmul.f32 1.0, %v351
    %353 = vrot.lane.b32.xlu0 %v344, 32
    %v354 = vpop.permute.xlu0 %353
    %v356 = vmul.f32 %v352, %v354
    %358 = vrot.lane.b32.xlu0 %v356, 64
    %v359 = vpop.permute.xlu0 %358
    %v361 = vadd.f32 %v346, %v359
    %v362 = vtanh.pop %v361
    %v363 = vsub.f32 1.0, %v352
    %365 = vrot.lane.b32.xlu0 %v362, 96
    %v366 = vpop.permute.xlu0 %365
    %v368 = vmul.f32 %v363, %v366
    %v369 = vld [vmem:[%s3] sm:$0xff]
    %v370 = vld [vmem:[%s3 + $0x8] sm:$0xff]
    %v371 = vld [vmem:[%s3 + $0x10] sm:$0xff]
    %v372 = vld [vmem:[%s3 + $0x18] sm:$0xff]
    %v373 = vld [vmem:[%s3 + $0x20] sm:$0xff]
    %v374 = vld [vmem:[%s3 + $0x28] sm:$0xff]
    %v375 = vld [vmem:[%s3 + $0x30] sm:$0xff]
    %v376 = vld [vmem:[%s3 + $0x38] sm:$0xff]
    %v378 = vrot.slane %v368, 2
    %379 = vrot.lane.b32.xlu0 %v378, 96
    %v380 = vpop.permute.xlu0 %379
    %vm381 = vcmask 261120
    %v382 = vsel %vm381, %v380, 0
    %384 = vmatprep.subr.mxu0 0.0
    %385 = vmatpush1.msra.mxu0 %v373
    %386 = vmatprep.subr.mxu0 0.0
    %387 = vmatpush1.msra.mxu0 %v374
    %388 = vmatprep.subr.mxu0 0.0
    %389 = vmatpush1.msra.mxu0 %v375
    %390 = vmatprep.subr.mxu0 0.0
    %391 = vmatpush1.msra.mxu0 %v376
    %392 = vmatprep.subr.mxu0 0.0
    %393 = vmatpush1.msra.mxu0 0.0
    %394 = vmatprep.subr.mxu0 0.0
    %395 = vmatpush1.msra.mxu0 0.0
    %396 = vmatprep.subr.mxu0 0.0
    %397 = vmatpush1.msra.mxu0 0.0
    %398 = vmatprep.subr.mxu0 0.0
    %399 = vmatpush1.msra.mxu0 0.0
    %400 = vmatprep.subr.mxu0 0.0
    %401 = vmatpush1.msra.mxu0 0.0
    %402 = vmatprep.subr.mxu0 0.0
    %403 = vmatpush1.msra.mxu0 0.0
    %404 = vmatprep.subr.mxu0 0.0
    %405 = vmatpush1.msra.mxu0 0.0
    %406 = vmatprep.subr.mxu0 0.0
    %407 = vmatpush1.msra.mxu0 0.0
    %408 = vmatprep.subr.mxu0 0.0
    %409 = vmatpush1.msra.mxu0 0.0
    %410 = vmatprep.subr.mxu0 0.0
    %411 = vmatpush1.msra.mxu0 0.0
    %412 = vmatprep.subr.mxu0 0.0
    %413 = vmatpush1.msra.mxu0 0.0
    %414 = vmatprep.subr.mxu0 0.0
    %415 = vmatpush1.msra.mxu0 0.0
    %416 = vmatprep.subr.mxu0 0.0
    %417 = vmatpush1.msra.mxu0 0.0
    %418 = vmatprep.subr.mxu0 0.0
    %419 = vmatpush1.msra.mxu0 0.0
    %420 = vmatprep.subr.mxu0 0.0
    %421 = vmatpush1.msra.mxu0 0.0
    %422 = vmatprep.subr.mxu0 0.0
    %423 = vmatpush1.msra.mxu0 0.0
    %424 = vmatprep.subr.mxu0 0.0
    %425 = vmatpush1.msra.mxu0 0.0
    %426 = vmatprep.subr.mxu0 0.0
    %427 = vmatpush1.msra.mxu0 0.0
    %428 = vmatprep.subr.mxu0 0.0
    %429 = vmatpush1.msra.mxu0 0.0
    %430 = vmatprep.subr.mxu0 0.0
    %431 = vmatpush1.msra.mxu0 0.0
    %432 = vmatprep.subr.mxu0 0.0
    %433 = vmatpush1.msra.mxu0 0.0
    %434 = vmatprep.subr.mxu0 0.0
    %435 = vmatpush1.msra.mxu0 0.0
    %436 = vmatprep.subr.mxu0 0.0
    %437 = vmatpush1.msra.mxu0 0.0
    %438 = vmatprep.subr.mxu0 0.0
    %439 = vmatpush1.msra.mxu0 0.0
    %440 = vmatprep.subr.mxu0 0.0
    %441 = vmatpush1.msra.mxu0 0.0
    %442 = vmatprep.subr.mxu0 0.0
    %443 = vmatpush1.msra.mxu0 0.0
    %444 = vmatprep.subr.mxu0 0.0
    %445 = vmatpush1.msra.mxu0 0.0
    %446 = vmatprep.subr.mxu0 0.0
    %447 = vmatpush1.msra.mxu0 0.0
    %448 = vmatprep.mubr.f32.mxu0 0.0
    %449 = vmatmul.mubr.f32.gmra.mrb[0].mxu0 %v382
    %v450 = vpop.f32.mrb[0].mxu0
    %v451 = vadd.f32 0.0, %v450
    %v452 = vpop.f32.mrb[0].mxu0
    %453 = vdwg.mxu0
    %454 = vrot.lane.b32.xlu0 %v368, 96
    %v455 = vpop.permute.xlu0 %454
    %v456 = vsel %vm381, %v455, 0
    %458 = vmatprep.subr.mxu0 0.0
    %459 = vmatpush1.msra.mxu0 %v369
    %460 = vmatprep.subr.mxu0 0.0
    %461 = vmatpush1.msra.mxu0 %v370
    %462 = vmatprep.subr.mxu0 0.0
    %463 = vmatpush1.msra.mxu0 %v371
    %464 = vmatprep.subr.mxu0 0.0
    %465 = vmatpush1.msra.mxu0 %v372
    %466 = vmatprep.subr.mxu0 0.0
    %467 = vmatpush1.msra.mxu0 0.0
    %468 = vmatprep.subr.mxu0 0.0
    %469 = vmatpush1.msra.mxu0 0.0
    %470 = vmatprep.subr.mxu0 0.0
    %471 = vmatpush1.msra.mxu0 0.0
    %472 = vmatprep.subr.mxu0 0.0
    %473 = vmatpush1.msra.mxu0 0.0
    %474 = vmatprep.subr.mxu0 0.0
    %475 = vmatpush1.msra.mxu0 0.0
    %476 = vmatprep.subr.mxu0 0.0
    %477 = vmatpush1.msra.mxu0 0.0
    %478 = vmatprep.subr.mxu0 0.0
    %479 = vmatpush1.msra.mxu0 0.0
    %480 = vmatprep.subr.mxu0 0.0
    %481 = vmatpush1.msra.mxu0 0.0
    %482 = vmatprep.subr.mxu0 0.0
    %483 = vmatpush1.msra.mxu0 0.0
    %484 = vmatprep.subr.mxu0 0.0
    %485 = vmatpush1.msra.mxu0 0.0
    %486 = vmatprep.subr.mxu0 0.0
    %487 = vmatpush1.msra.mxu0 0.0
    %488 = vmatprep.subr.mxu0 0.0
    %489 = vmatpush1.msra.mxu0 0.0
    %490 = vmatprep.subr.mxu0 0.0
    %491 = vmatpush1.msra.mxu0 0.0
    %492 = vmatprep.subr.mxu0 0.0
    %493 = vmatpush1.msra.mxu0 0.0
    %494 = vmatprep.subr.mxu0 0.0
    %495 = vmatpush1.msra.mxu0 0.0
    %496 = vmatprep.subr.mxu0 0.0
    %497 = vmatpush1.msra.mxu0 0.0
    %498 = vmatprep.subr.mxu0 0.0
    %499 = vmatpush1.msra.mxu0 0.0
    %500 = vmatprep.subr.mxu0 0.0
    %501 = vmatpush1.msra.mxu0 0.0
    %502 = vmatprep.subr.mxu0 0.0
    %503 = vmatpush1.msra.mxu0 0.0
    %504 = vmatprep.subr.mxu0 0.0
    %505 = vmatpush1.msra.mxu0 0.0
    %506 = vmatprep.subr.mxu0 0.0
    %507 = vmatpush1.msra.mxu0 0.0
    %508 = vmatprep.subr.mxu0 0.0
    %509 = vmatpush1.msra.mxu0 0.0
    %510 = vmatprep.subr.mxu0 0.0
    %511 = vmatpush1.msra.mxu0 0.0
    %512 = vmatprep.subr.mxu0 0.0
    %513 = vmatpush1.msra.mxu0 0.0
    %514 = vmatprep.subr.mxu0 0.0
    %515 = vmatpush1.msra.mxu0 0.0
    %516 = vmatprep.subr.mxu0 0.0
    %517 = vmatpush1.msra.mxu0 0.0
    %518 = vmatprep.subr.mxu0 0.0
    %519 = vmatpush1.msra.mxu0 0.0
    %520 = vmatprep.subr.mxu0 0.0
    %521 = vmatpush1.msra.mxu0 0.0
    %522 = vmatprep.mubr.f32.mxu0 0.0
    %523 = vmatmul.mubr.f32.gmra.mrb[0].mxu0 %v456
    %v524 = vpop.f32.mrb[0].mxu0
    %v525 = vadd.f32 %v451, %v524
    %v526 = vpop.f32.mrb[0].mxu0
    %527 = vdwg.mxu0
    %v528 = vld [vmem:[%s4] sm:$0x1]
    %v530 = vlaneseq
    %v531 = vshrl.u32 %v530, 7
    %v532 = vsub.s32 0, %v531
    %v533 = vrot.slane %v528, %v532
    %v535 = vadd.f32 %v525, %v533
    %536 = vst [vmem:[#allocation2] sm:$0x3] %v535
    // Predicated region
    $region22: #{gru_encoder_forward.1} parent=1 // pred_check
      _
    $region23: #{gru_encoder_forward.1} parent=1 // pred_check_branch
      %538 = sbr.rel (0) target = $region25
    $region24: #{gru_encoder_forward.1} parent=1 // pred_region
      %s540 = ssub.s32 32, 32
      %541 = vsyncadd [#allocation3], %s540
      %s543 = sshll.u32 [#allocation2], 4
      %s544 = int_to_ptr.vmem [resolvable:$true] %s543
      %546 = dma.vmem_to_hbm [thread:$0]  %s544, 32, %s5, [#allocation3]
    $region25: #{gru_encoder_forward.1} parent=1 // pred_fallthru
      _
    // Predicated region
    $region26: #{gru_encoder_forward.1} parent=1 // pred_check
      _
    $region27: #{gru_encoder_forward.1} parent=1 // pred_check_branch
      %548 = sbr.rel (0) target = $region29
    $region28: #{gru_encoder_forward.1} parent=1 // pred_region
      %549 = dma.done [#allocation3], 32
    $region29: #{gru_encoder_forward.1} parent=1 // pred_fallthru
      _
    %550 = vsyncpa [#allocation3], 1

</llo_original>
